<compile_context>
chip_gen: v7x
topology: tpu7x:2x2x1
jax: 0.10.0
libtpu: 0.0.40
codegen_flags: <defaults>
</compile_context>

<pallas_src>
import functools

import jax
import jax.numpy as jnp
from jax import lax
from jax.experimental import pallas as pl
from jax.experimental.pallas import tpu as pltpu

_TARGET_BLOCK_BYTES = 8 * 1024 * 1024   # ~8 MiB per block buffer (review: 4-8 MiB)
_VMEM_HEADROOM = 16 * 1024 * 1024       # leave room for compiler-internal scratch
_DEFAULT_VMEM = 64 * 1024 * 1024        # conservative fallback (v7x per-core VMEM)


# ---------------------------------------------------------------------------
# Per-generation VMEM budget
# ---------------------------------------------------------------------------
@functools.lru_cache(maxsize=None)
def _vmem_capacity_bytes():
    try:
        info = pltpu.get_tpu_info()
        cap = int(getattr(info, "vmem_capacity_bytes", _DEFAULT_VMEM))
        return cap if cap > 0 else _DEFAULT_VMEM
    except Exception:  # pragma: no cover - defensive: query is best-effort
        return _DEFAULT_VMEM


def _vmem_budget_bytes():
    return max(16 << 20, _vmem_capacity_bytes() - _VMEM_HEADROOM)


def _plan_blocks(rows, lane, itemsize, n_buffers, max_block_bytes=None):
    """Pick block rows (multiple of 8) sized in BYTES against the VMEM budget."""
    per_buffer = max(8 * lane * itemsize,
                     (_vmem_budget_bytes() - (2 << 20)) // max(n_buffers, 1))
    target = _TARGET_BLOCK_BYTES if max_block_bytes is None else int(max_block_bytes)
    block_bytes = min(target, per_buffer)
    block_rows = max(8, (block_bytes // (lane * itemsize)) // 8 * 8)
    if rows <= block_rows:
        return int(rows), 1                      # single full-array block fast path
    return int(block_rows), int(pl.cdiv(rows, block_rows))


def _vmem_limit_bytes(n_buffers, block_bytes):
    want = n_buffers * block_bytes + (8 << 20)
    return int(min(_vmem_budget_bytes(), max(32 << 20, want)))


# ---------------------------------------------------------------------------
# Kernels
# ---------------------------------------------------------------------------
def _partial_sum_kernel(*refs, elem_fn, n_in, block_rows, kpart, n_valid, masked):
    """Accumulate the element-wise loss of one (br, lane) tile into an (8, lane)
    per-split partial-sum output block (output is the accumulator across the
    'arbitrary' k axis; the leading split axis is 'parallel')."""
    x_refs = refs[:n_in]
    part_ref = refs[n_in]
    k = pl.program_id(1)

    @pl.when(k == 0)
    def _init():
        part_ref[...] = jnp.zeros_like(part_ref)

    # Subclass element-wise loss, computed in the tile (never hits HBM),
    # accumulated in f32.
    vals = elem_fn(*[r[...] for r in x_refs]).astype(jnp.float32)
    lane = vals.shape[1]

    if masked:
        # Grid coverage exceeds the valid element count (partial last block,
        # ragged tail, or duplicated clamped block of an uneven split):
        # zero every element whose flat index is >= n_valid.
        blk = pl.program_id(0) * kpart + k       # logical (unclamped) block id
        rid = blk * block_rows + lax.broadcasted_iota(jnp.int32, vals.shape, 0)
        cid = lax.broadcasted_iota(jnp.int32, vals.shape, 1)
        last_row, last_col = n_valid // lane, n_valid % lane
        keep = (rid < last_row) | ((rid == last_row) & (cid < last_col))
        vals = jnp.where(keep, vals, 0.0)

    if block_rows % 8 == 0:
        # Fold by vreg-height: pure VPU adds, no per-step XLU sublane collapse.
        part_ref[...] += vals.reshape(block_rows // 8, 8, lane).sum(axis=0)
    else:
        # Tiny single-block case (rows < 8-ish): a one-off keepdims sum is fine.
        part_ref[0:1, :] += jnp.sum(vals, axis=0, keepdims=True)


def _scale_kernel(*refs, elem_fn, n_in):
    """reduction='none': o = weight * elem_fn(x...), native dtype in/out."""
    w_ref = refs[0]
    x_refs = refs[1:1 + n_in]
    o_ref = refs[1 + n_in]
    vals = elem_fn(*[r[...] for r in x_refs])
    o_ref[...] = (vals * w_ref[0].astype(vals.dtype)).astype(o_ref.dtype)


# ---------------------------------------------------------------------------
# Layout helpers (all static: derived from shapes only)
# ---------------------------------------------------------------------------
def _choose_lanes(n):
    """Widest lane dim (multiple of 128) that divides n; None if ragged."""
    for lane in (1024, 512, 256, 128):
        if n % lane == 0:
            return lane
    return None


def _clamped_index_map(s, k, *, kpart, max_blk):
    # Clamp so the DMA never starts past the array; the kernel's element mask
    # zeroes the duplicated block's contribution.
    return (jnp.minimum(s * kpart + k, max_blk), 0)


def _as_2d(inputs, n):
    """Lane-aligned 2-D views. Aligned case: metadata reshapes only."""
    lane = _choose_lanes(n)
    if lane is not None:
        rows = n // lane
        return [t.reshape(rows, lane) for t in inputs], rows, lane, False
    # TODO(synk): ragged tail — the pad only exists to form the 2-D view; the
    #             in-kernel element mask makes its contents irrelevant.
    lane = 128
    rows = int(pl.cdiv(n, lane))
    pad = rows * lane - n
    xs = [jnp.pad(t.reshape(-1), (0, pad)).reshape(rows, lane) for t in inputs]
    return xs, rows, lane, True


# ---------------------------------------------------------------------------
# Wrapper ("BaseLoss" weight + reduction machinery, with fusable forward hook)
# ---------------------------------------------------------------------------
@functools.partial(jax.jit,
                   static_argnames=("reduction", "elementwise_fn", "max_block_bytes"))
def base_loss_apply(*inputs, weight=1.0, reduction="mean",
                    elementwise_fn=None, max_block_bytes=None):
    """Apply BaseLoss' weight + reduction.

    inputs:          either a precomputed element-wise loss tensor, or the raw
                     tensors a subclass loss consumes (same shape each).
    elementwise_fn:  optional shape-preserving element-wise map (the subclass
                     forward) fused into the tile; identity if None.
    max_block_bytes: optional override of the per-block byte budget (tuning /
                     test coverage).
    """
    if not inputs:
        raise ValueError("base_loss_apply needs at least one input tensor")
    shape = inputs[0].shape
    for t in inputs[1:]:
        if t.shape != shape:
            raise ValueError("all inputs must share a shape")
    if elementwise_fn is None:
        if len(inputs) != 1:
            raise ValueError("multiple inputs require elementwise_fn")
        elem_fn = lambda x: x
    else:
        elem_fn = elementwise_fn

    n = inputs[0].size
    n_in = len(inputs)
    itemsize = max(t.dtype.itemsize for t in inputs)
    xs2d, rows, lane, ragged = _as_2d(inputs, n)

    # ------------------------------------------------------------- 'none' ---
    if reduction == "none":
        out_dtype = jnp.result_type(*inputs)
        n_buffers = 2 * (n_in + 1)                      # double-buffered in + out
        br, nblk = _plan_blocks(rows, lane, itemsize, n_buffers, max_block_bytes)
        block_bytes = br * lane * itemsize
        w = jnp.asarray(weight, jnp.float32).reshape(1)  # runtime SMEM scalar
        kernel = functools.partial(_scale_kernel, elem_fn=elem_fn, n_in=n_in)
        out2d = pl.pallas_call(
            kernel,
            out_shape=jax.ShapeDtypeStruct((rows, lane), out_dtype),
            grid_spec=pltpu.PrefetchScalarGridSpec(
                num_scalar_prefetch=0,
                grid=(nblk,),
                in_specs=[pl.BlockSpec(memory_space=pltpu.MemorySpace.SMEM)]
                         + [pl.BlockSpec((br, lane), lambda i: (i, 0))] * n_in,
                out_specs=pl.BlockSpec((br, lane), lambda i: (i, 0)),
            ),
            compiler_params=pltpu.CompilerParams(
                dimension_semantics=("parallel",),
                vmem_limit_bytes=_vmem_limit_bytes(n_buffers, block_bytes)),
        )(w, *xs2d)
        if ragged:
            return out2d.reshape(-1)[:n].reshape(shape)
        return out2d.reshape(shape)                     # metadata-only reshape

    if reduction not in ("mean", "sum"):
        raise ValueError(f"unsupported reduction: {reduction}")

    # ------------------------------------------------------ 'mean' / 'sum' ---
    n_buffers = 2 * n_in                                # partials output is tiny
    br, nblk = _plan_blocks(rows, lane, itemsize, n_buffers, max_block_bytes)
    block_bytes = br * lane * itemsize

    # Two partial sums: sharded across TensorCores on multi-TC chips (v7x),
    # just an outer loop position on single-TC v5e/v6e (no measurable cost).
    split = 2 if nblk >= 2 else 1
    kpart = int(pl.cdiv(nblk, split))
    masked = (split * kpart * br * lane != n)

    kernel = functools.partial(
        _partial_sum_kernel, elem_fn=elem_fn, n_in=n_in,
        block_rows=br, kpart=kpart, n_valid=n, masked=masked)
    x_map = functools.partial(_clamped_index_map, kpart=kpart, max_blk=nblk - 1)

    partials = pl.pallas_call(
        kernel,
        out_shape=jax.ShapeDtypeStruct((split * 8, lane), jnp.float32),
        grid_spec=pltpu.PrefetchScalarGridSpec(
            num_scalar_prefetch=0,
            grid=(split, kpart),
            in_specs=[pl.BlockSpec((br, lane), x_map)] * n_in,
            out_specs=pl.BlockSpec((8, lane), lambda s, k: (s, 0)),
        ),
        compiler_params=pltpu.CompilerParams(
            dimension_semantics=("parallel", "arbitrary"),
            vmem_limit_bytes=_vmem_limit_bytes(n_buffers, block_bytes)),
    )(*xs2d)

    # Tiny (split*8, lane) combine + weight + 1/N in the wrapper (fuses into a
    # single trivial XLA op; negligible vs. the streamed tensor).
    inv = (1.0 / n) if reduction == "mean" else 1.0
    return jnp.sum(partials) * jnp.asarray(weight, jnp.float32) * jnp.float32(inv)


# ---------------------------------------------------------------------------
# Demo / self-check
# ---------------------------------------------------------------------------
if __name__ == "__main__":
    key = jax.random.PRNGKey(0)
    k1, k2, k3, k4 = jax.random.split(key, 4)
    weight = 0.5

    # Element-wise loss map as a subclass would produce (NCHW-shaped).
    x = jax.random.normal(k1, (2, 4, 16, 16), dtype=jnp.float32)
    out_mean = base_loss_apply(x, weight=weight, reduction="mean")
    out_sum = base_loss_apply(x, weight=weight, reduction="sum")
    out_none = base_loss_apply(x, weight=weight, reduction="none")

    # Fused subclass forward (MSE-style): loss map never materialized in HBM.
    pred = jax.random.normal(k2, (2, 4, 16, 16), dtype=jnp.float32)
    tgt = jax.random.normal(k3, (2, 4, 16, 16), dtype=jnp.float32)
    mse_fn = lambda p, t: (p - t) ** 2
    out_fused = base_loss_apply(pred, tgt, weight=weight, reduction="mean",
                                elementwise_fn=mse_fn)

    # Force small blocks to exercise multi-block grid, dual partial sums,
    # clamped index map + element mask, and partial last output block.
    y = jax.random.normal(k4, (10, 4, 32, 32), dtype=jnp.float32)
    out_y_mean = base_loss_apply(y, weight=weight, reduction="mean",
                                 max_block_bytes=32 * 1024)
    out_y_none = base_loss_apply(y, weight=weight, reduction="none",
                                 max_block_bytes=64 * 1024)

    # Ragged numel (not a multiple of 128): in-kernel tail mask.
    z = jax.random.normal(k1, (3, 5, 7, 11), dtype=jnp.float32)
    out_z_mean = base_loss_apply(z, weight=weight, reduction="mean")

    jax.block_until_ready((out_mean, out_sum, out_none, out_fused,
                           out_y_mean, out_y_none, out_z_mean))

    assert jnp.allclose(out_mean, weight * jnp.mean(x), atol=1e-5, rtol=1e-5)
    assert jnp.allclose(out_sum, weight * jnp.sum(x), atol=1e-4, rtol=1e-5)
    assert jnp.allclose(out_none, weight * x, atol=1e-6)
    assert out_none.shape == x.shape and out_none.dtype == x.dtype
    assert jnp.allclose(out_fused, weight * jnp.mean((pred - tgt) ** 2),
                        atol=1e-5, rtol=1e-5)
    assert jnp.allclose(out_y_mean, weight * jnp.mean(y), atol=1e-5, rtol=1e-5)
    assert jnp.allclose(out_y_none, weight * y, atol=1e-6)
    assert jnp.allclose(out_z_mean, weight * jnp.mean(z), atol=1e-5, rtol=1e-5)

    print("KERNEL_OK")
</pallas_src>

<mosaic_0001>
module attributes {stable_mosaic.version = 11 : i64} {
  func.func @_partial_sum_kernel(%arg0: i32, %arg1: i32, %arg2: memref<2x1024xf32, #tpu.memory_space<vmem>>, %arg3: memref<8x1024xf32, #tpu.memory_space<vmem>>) attributes {dimension_semantics = [#tpu.dimension_semantics<parallel>, #tpu.dimension_semantics<arbitrary>], iteration_bounds = array<i64: 1, 1>, scalar_prefetch = 0 : i64, scratch_operands = 0 : i64, tpu.core_type = #tpu.core_type<tc>, window_params = [{transform_indices = @transform_0, window_bounds = array<i64: 2, 1024>}, {transform_indices = @transform_1, window_bounds = array<i64: 8, 1024>}]} {
    %c0_i32 = arith.constant 0 : i32
    %0 = arith.cmpi eq, %arg1, %c0_i32 : i32
    %1 = arith.extui %0 : i1 to i32
    %c0_i32_0 = arith.constant 0 : i32
    %2 = arith.cmpi ne, %1, %c0_i32_0 : i32
    scf.if %2 {
      %cst_6 = arith.constant 0.000000e+00 : f32
      %9 = vector.broadcast %cst_6 : f32 to vector<8x1024xf32>
      %c0_7 = arith.constant 0 : index
      %c0_8 = arith.constant 0 : index
      %10 = vector.load %arg3[%c0_7, %c0_8] : memref<8x1024xf32, #tpu.memory_space<vmem>>, vector<8x1024xf32>
      tpu.vector_store %arg3[%c0_7, %c0_8], %9 {strides = array<i32>} : memref<8x1024xf32, #tpu.memory_space<vmem>>, vector<8x1024xf32>,
    } else {
    }
    %c0 = arith.constant 0 : index
    %c0_1 = arith.constant 0 : index
    %3 = vector.load %arg2[%c0, %c0_1] : memref<2x1024xf32, #tpu.memory_space<vmem>>, vector<2x1024xf32>
    %c0_2 = arith.constant 0 : index
    %c0_3 = arith.constant 0 : index
    %4 = vector.load %arg3[%c0_2, %c0_3] : memref<8x1024xf32, #tpu.memory_space<vmem>>, vector<1x1024xf32>
    %cst = arith.constant dense<0.000000e+00> : vector<1024xf32>
    %5 = vector.multi_reduction <add>, %3, %cst [0] : vector<2x1024xf32> to vector<1024xf32>
    %6 = vector.shape_cast %5 : vector<1024xf32> to vector<1x1024xf32>
    %7 = arith.addf %4, %6 : vector<1x1024xf32>
    %c0_4 = arith.constant 0 : index
    %c0_5 = arith.constant 0 : index
    %8 = vector.load %arg3[%c0_4, %c0_5] : memref<8x1024xf32, #tpu.memory_space<vmem>>, vector<1x1024xf32>
    tpu.vector_store %arg3[%c0_4, %c0_5], %7 {strides = array<i32>} : memref<8x1024xf32, #tpu.memory_space<vmem>>, vector<1x1024xf32>,
    return
  }
  func.func @transform_0(%arg0: i32, %arg1: i32) -> (i32, i32) {
    %c1_i32 = arith.constant 1 : i32
    %0 = arith.muli %arg0, %c1_i32 : i32
    %1 = arith.addi %0, %arg1 : i32
    %c0_i32 = arith.constant 0 : i32
    %2 = arith.minsi %1, %c0_i32 : i32
    %c0_i32_0 = arith.constant 0 : i32
    %c0_i32_1 = arith.constant 0 : i32
    return %2, %c0_i32_0 : i32, i32
  }
  func.func @transform_1(%arg0: i32, %arg1: i32) -> (i32, i32) {
    %c0_i32 = arith.constant 0 : i32
    %c0_i32_0 = arith.constant 0 : i32
    return %arg0, %c0_i32 : i32, i32
  }
}

</mosaic_0001>

<llo_original>
// kernel: base_loss_apply.1
$region0: #{base_loss_apply.1}
  #allocation0 [shape = 'u32[]', space=smem, size = 0x4, offset = 0x4, fixed_abs, tag = 'smem constant byte address 0x4 - core index']
  #allocation1 [shape = 'u32[144,128]{1,0:T(1,128)}', space=vmem, size = 0x12000, scoped, tag = 'internal scratch']
  %s0 = inlined_call_operand.vmem [shape: f32[2,1024], index: 0, kind: input, shape index: {}]
  %s1 = inlined_call_operand.vmem [shape: f32[8,1024], index: 1, kind: output, shape index: {}]
  %s2 = sld [smem:[#allocation0]]
  $region18: #{base_loss_apply.1} parent=0
    _
  %s4 = ssub.s32 1, %s2
  %s5 = scalar_select 0, %s4, %s2
  // Predicated region
  $region2: #{base_loss_apply.1} parent=0 // pred_check
    _
  $region3: #{base_loss_apply.1} parent=0 // pred_check_branch
    %7 = sbr.rel (0) target = $region5
  $region4: #{base_loss_apply.1} parent=0 // pred_region
    %s8 = sadd.s32 0, 0
    %p9 = scmp.lt.s32.totalorder %s8, 0
    %s10 = scalar_select %p9, %s8, 0
    %p11 = scmp.lt.s32.totalorder %s10, 0
    %s12 = scalar_select %p11, %s10, 0
    %s13 = smul.addr %s12, 8
    %s14 = smul.addr %s13, 2
    %s15 = scalar_lea.vmem %s0, %s14
    %s16 = sadd.s32 0, 0
    %p17 = scmp.lt.s32.totalorder %s16, 0
    %s18 = scalar_select %p17, %s16, 0
  $region5: #{base_loss_apply.1} parent=0 // pred_fallthru
    _
  %s19 = sadd.s32 0, 0
  %p20 = scmp.lt.s32.totalorder %s19, 0
  %s21 = scalar_select %p20, %s19, 0
  %p22 = scmp.lt.s32.totalorder %s21, 0
  %s23 = scalar_select %p22, %s21, 0
  %s24 = smul.addr %s23, 8
  %s25 = smul.addr %s24, 2
  %s26 = scalar_lea.vmem %s0, %s25
  %s27 = sadd.s32 0, 0
  %p28 = scmp.lt.s32.totalorder %s27, 0
  %s29 = scalar_select %p28, %s27, 0
  %p30 = scmp.lt.s32.totalorder %s29, 0
  %s31 = scalar_select %p30, %s29, 0
  %s32 = smul.addr %s31, 8
  %s33 = smul.addr %s32, 2
  %s34 = scalar_lea.vmem %s0, %s33
  %s35 = sadd.s32 0, 0
  %p36 = scmp.lt.s32.totalorder %s35, 0
  %s37 = scalar_select %p36, %s35, 0
  %p38 = scmp.eq.s32.totalorder 0, 0
  // Predicated region
  $region6: #{base_loss_apply.1} parent=0 // pred_check
    %p39 = pneg %p38
  $region7: #{base_loss_apply.1} parent=0 // pred_check_branch
    %41 = sbr.rel (%p39) target = $region9
  $region8: #{base_loss_apply.1} parent=0 // pred_region
    %42 = vst [vmem:[%s1] sm:$0xff] 0.0
    %43 = vst [vmem:[%s1 + $0x8] sm:$0xff] 0.0
    %44 = vst [vmem:[%s1 + $0x10] sm:$0xff] 0.0
    %45 = vst [vmem:[%s1 + $0x18] sm:$0xff] 0.0
    %46 = vst [vmem:[%s1 + $0x20] sm:$0xff] 0.0
    %47 = vst [vmem:[%s1 + $0x28] sm:$0xff] 0.0
    %48 = vst [vmem:[%s1 + $0x30] sm:$0xff] 0.0
    %49 = vst [vmem:[%s1 + $0x38] sm:$0xff] 0.0
  $region9: #{base_loss_apply.1} parent=0 // pred_fallthru
    _
  %v50 = vld [vmem:[%s34] sm:$0xff]
  %v51 = vld [vmem:[%s34 + $0x8] sm:$0xff]
  %v52 = vld [vmem:[%s1] ss:$8 sm:$0xf]
  %v53 = vld [vmem:[%s1] ss:$8 sm:$0xf0]
  %v54 = vor.u32 %v52, %v53
  %v57 = vcombine.high %v50, %v50
  %v59 = vunpack.c.l.s4 1983009808
  %v60 = vunpack.c.0.s8 %v59
  %v61 = vlaneseq
  %v62 = vshrl.u32 %v61, 7
  %v63 = vsub.s32 %v60, %v62
  %v64 = vrot.slane %v50, %v63
  %v66 = vunpack.c.l.s4 1983009808
  %v67 = vunpack.c.0.s8 %v66
  %v68 = vlaneseq
  %v69 = vshrl.u32 %v68, 7
  %v70 = vsub.s32 %v67, %v69
  %v71 = vrot.slane %v57, %v70
  %v72 = vcombine.high %v64, %v64
  %v73 = vcombine.high %v71, %v71
  %v74 = vcombine.high %v51, %v51
  %v76 = vunpack.c.l.s4 1983009808
  %v77 = vunpack.c.0.s8 %v76
  %v78 = vlaneseq
  %v79 = vshrl.u32 %v78, 7
  %v80 = vsub.s32 %v77, %v79
  %v81 = vrot.slane %v51, %v80
  %v83 = vunpack.c.l.s4 1983009808
  %v84 = vunpack.c.0.s8 %v83
  %v85 = vlaneseq
  %v86 = vshrl.u32 %v85, 7
  %v87 = vsub.s32 %v84, %v86
  %v88 = vrot.slane %v74, %v87
  %v89 = vcombine.high %v81, %v81
  %v90 = vcombine.high %v88, %v88
  %vm99 = vcmask 1041408
  %v100 = vsel %vm99, %v64, 0.0
  %v101 = vrot.slane %v100, 4
  %v102 = vadd.f32 %v100, %v101
  %v103 = vrot.slane %v102, 2
  %v104 = vadd.f32 %v102, %v103
  %v105 = vrot.slane %v104, 1
  %v106 = vadd.f32 %v104, %v105
  %v107 = vsel %vm99, %v72, 0.0
  %v108 = vrot.slane %v107, 4
  %v109 = vadd.f32 %v107, %v108
  %v110 = vrot.slane %v109, 2
  %v111 = vadd.f32 %v109, %v110
  %v112 = vrot.slane %v111, 1
  %v113 = vadd.f32 %v111, %v112
  %v114 = vsel %vm99, %v71, 0.0
  %v115 = vrot.slane %v114, 4
  %v116 = vadd.f32 %v114, %v115
  %v117 = vrot.slane %v116, 2
  %v118 = vadd.f32 %v116, %v117
  %v119 = vrot.slane %v118, 1
  %v120 = vadd.f32 %v118, %v119
  %v121 = vsel %vm99, %v73, 0.0
  %v122 = vrot.slane %v121, 4
  %v123 = vadd.f32 %v121, %v122
  %v124 = vrot.slane %v123, 2
  %v125 = vadd.f32 %v123, %v124
  %v126 = vrot.slane %v125, 1
  %v127 = vadd.f32 %v125, %v126
  %v128 = vsel %vm99, %v81, 0.0
  %v129 = vrot.slane %v128, 4
  %v130 = vadd.f32 %v128, %v129
  %v131 = vrot.slane %v130, 2
  %v132 = vadd.f32 %v130, %v131
  %v133 = vrot.slane %v132, 1
  %v134 = vadd.f32 %v132, %v133
  %v135 = vsel %vm99, %v89, 0.0
  %v136 = vrot.slane %v135, 4
  %v137 = vadd.f32 %v135, %v136
  %v138 = vrot.slane %v137, 2
  %v139 = vadd.f32 %v137, %v138
  %v140 = vrot.slane %v139, 1
  %v141 = vadd.f32 %v139, %v140
  %v142 = vsel %vm99, %v88, 0.0
  %v143 = vrot.slane %v142, 4
  %v144 = vadd.f32 %v142, %v143
  %v145 = vrot.slane %v144, 2
  %v146 = vadd.f32 %v144, %v145
  %v147 = vrot.slane %v146, 1
  %v148 = vadd.f32 %v146, %v147
  %v149 = vsel %vm99, %v90, 0.0
  %v150 = vrot.slane %v149, 4
  %v151 = vadd.f32 %v149, %v150
  %v152 = vrot.slane %v151, 2
  %v153 = vadd.f32 %v151, %v152
  %v154 = vrot.slane %v153, 1
  %v155 = vadd.f32 %v153, %v154
  %v164 = vcombine.low %v106, %v113
  %v165 = vcombine.low %v120, %v127
  %v166 = vcombine.low %v134, %v141
  %v167 = vcombine.low %v148, %v155
  %v169 = vunpack.c.l.s4 1966171168
  %v170 = vunpack.c.0.s8 %v169
  %v171 = vlaneseq
  %v172 = vshrl.u32 %v171, 7
  %v173 = vsub.s32 %v170, %v172
  %v174 = vrot.slane %v164, %v173
  %v176 = vunpack.c.l.s4 1966171168
  %v177 = vunpack.c.0.s8 %v176
  %v178 = vlaneseq
  %v179 = vshrl.u32 %v178, 7
  %v180 = vsub.s32 %v177, %v179
  %v181 = vrot.slane %v165, %v180
  %v183 = vunpack.c.l.s4 1966171168
  %v184 = vunpack.c.0.s8 %v183
  %v185 = vlaneseq
  %v186 = vshrl.u32 %v185, 7
  %v187 = vsub.s32 %v184, %v186
  %v188 = vrot.slane %v166, %v187
  %v190 = vunpack.c.l.s4 1966171168
  %v191 = vunpack.c.0.s8 %v190
  %v192 = vlaneseq
  %v193 = vshrl.u32 %v192, 7
  %v194 = vsub.s32 %v191, %v193
  %v195 = vrot.slane %v167, %v194
  %v196 = vcombine.low %v174, %v181
  %v197 = vcombine.low %v188, %v195
  %v199 = vunpack.c.l.s4 1966171168
  %v200 = vunpack.c.0.s8 %v199
  %v201 = vlaneseq
  %v202 = vshrl.u32 %v201, 7
  %v203 = vsub.s32 %v200, %v202
  %v204 = vrot.slane %v196, %v203
  %v206 = vunpack.c.l.s4 1966171168
  %v207 = vunpack.c.0.s8 %v206
  %v208 = vlaneseq
  %v209 = vshrl.u32 %v208, 7
  %v210 = vsub.s32 %v207, %v209
  %v211 = vrot.slane %v197, %v210
  %v212 = vcombine.low %v204, %v211
  %v214 = vadd.f32 %v54, %v212
  %215 = vst [vmem:[%s1] ss:$8 sm:$0xf] %v214
  %216 = vst [vmem:[%s1] ss:$8 sm:$0xf0] %v214
  // Predicated region
  $region10: #{base_loss_apply.1} parent=0 // pred_check
    _
  $region11: #{base_loss_apply.1} parent=0 // pred_check_branch
    %218 = sbr.rel (0) target = $region13
  $region12: #{base_loss_apply.1} parent=0 // pred_region
    _
  $region13: #{base_loss_apply.1} parent=0 // pred_fallthru
    _
  // Predicated region
  $region14: #{base_loss_apply.1} parent=0 // pred_check
    _
  $region15: #{base_loss_apply.1} parent=0 // pred_check_branch
    %220 = sbr.rel (0) target = $region17
  $region16: #{base_loss_apply.1} parent=0 // pred_region
    _
  $region17: #{base_loss_apply.1} parent=0 // pred_fallthru
    _

</llo_original>
